<compile_context>
chip_gen: v5e
topology: v5e:2x2
jax: 0.10.0
libtpu: 0.0.40
codegen_flags: <defaults>
</compile_context>

<pallas_src>
import jax
import jax.numpy as jnp
from jax.experimental import pallas as pl
from jax.experimental.pallas import tpu as pltpu


def _round_up(x, m):
    return (x + m - 1) // m * m


def cls_head_kernel(cls_ref, w_ref, b_ref, out_ref):
    # cls_ref : (TB, H)     f32  — CLS activations for this batch tile
    # w_ref   : (H, O_pad)  bf16 — linear weight (transposed), resident across grid
    # b_ref   : (1, O_pad)  f32  — bias, resident across grid
    # out_ref : (TB, O_pad) f32  — lane-dense output tile
    x = cls_ref[...].astype(jnp.bfloat16)                       # bf16 operands for MXU
    y = jnp.dot(x, w_ref[...], preferred_element_type=jnp.float32)  # f32 accumulate
    out_ref[...] = (y + b_ref[...]).astype(out_ref.dtype)       # f32 bias add, unmasked vst


def bert_with_linear_head(hidden_states, w_t, b, *, max_batch_tile=128):
    """Pallas implementation of `linear(hidden_states[:, 0, :])`.

    hidden_states : (B, S, H) float32  — last hidden states of the bert_model
    w_t           : (H, O)    float32  — nn.Linear weight, transposed
    b             : (1, O)    float32  — nn.Linear bias
    returns       : (B, O)    float32
    """
    B, S, H = hidden_states.shape
    O = w_t.shape[1]

    # (1) Consume only the CLS row — never DMA the full (B, S, H) activations.
    cls = hidden_states[:, 0, :]                                 # (B, H)

    # (2) Lane-dense output: pad O up to a multiple of 128.
    O_pad = _round_up(max(O, 1), 128)
    w_pad = jnp.pad(w_t, ((0, 0), (0, O_pad - O))).astype(jnp.bfloat16)   # (H, O_pad) bf16
    b_pad = jnp.pad(b, ((0, 0), (0, O_pad - O))).astype(jnp.float32)      # (1, O_pad) f32

    # (3) Batch grid: tile a multiple of 8 (f32 sublane), up to 128 rows per MXU pass.
    B_pad = _round_up(B, 8)
    TB = min(max_batch_tile, B_pad)
    B_pad = _round_up(B_pad, TB)
    cls_p = jnp.pad(cls.astype(jnp.float32), ((0, B_pad - B), (0, 0)))    # (B_pad, H)

    grid = (pl.cdiv(B_pad, TB),)

    bytes_accessed = (
        B_pad * H * 4            # CLS activations (f32)
        + H * O_pad * 2          # weight (bf16), resident but fetched once
        + O_pad * 4              # bias
        + B_pad * O_pad * 4      # output
    )
    cost = pl.CostEstimate(
        flops=2 * B_pad * H * O_pad,
        transcendentals=0,
        bytes_accessed=bytes_accessed,
    )

    out_pad = pl.pallas_call(
        cls_head_kernel,
        out_shape=jax.ShapeDtypeStruct((B_pad, O_pad), jnp.float32),
        grid_spec=pltpu.PrefetchScalarGridSpec(
            num_scalar_prefetch=0,
            grid=grid,
            in_specs=[
                pl.BlockSpec((TB, H), lambda i: (i, 0)),        # batch-tiled CLS rows
                pl.BlockSpec((H, O_pad), lambda i: (0, 0)),     # weight: constant block (resident)
                pl.BlockSpec((1, O_pad), lambda i: (0, 0)),     # bias:   constant block (resident)
            ],
            out_specs=pl.BlockSpec((TB, O_pad), lambda i: (i, 0)),
        ),
        compiler_params=pltpu.CompilerParams(
            dimension_semantics=("parallel",),                  # batch axis: pipelined / dual-TC on v7x
        ),
        cost_estimate=cost,
    )(cls_p, w_pad, b_pad)

    return out_pad[:B, :O]


def init_linear_params(key, hidden_dim, output_dim):
    """Deterministic stand-in for torch.manual_seed(42) + xavier_normal_ / zeros_."""
    # xavier_normal_: std = sqrt(2 / (fan_in + fan_out)); torch weight shape is (O, H).
    std = (2.0 / (hidden_dim + output_dim)) ** 0.5
    w = jax.random.normal(key, (output_dim, hidden_dim), dtype=jnp.float32) * std
    b = jnp.zeros((1, output_dim), dtype=jnp.float32)
    return w.T, b  # store transposed (H, O) for the kernel


if __name__ == "__main__":
    B, S, H, O = 2, 8, 32, 16  # batch, seq, hidden_dim, output_dim

    key = jax.random.PRNGKey(0)
    k_hs, k_w = jax.random.split(key)

    # Stand-in for bert_model(**kwargs).hidden_states[-1]
    hidden_states = jax.random.normal(k_hs, (B, S, H), dtype=jnp.float32)
    w_t, b = init_linear_params(k_w, H, O)

    out = bert_with_linear_head(hidden_states, w_t, b)
    out = jax.block_until_ready(out)
    assert out.shape == (B, O)

    cls = hidden_states[:, 0, :]
    # Reference matching the kernel's bf16-operand / f32-accumulate matmul.
    ref_bf16 = jnp.dot(cls.astype(jnp.bfloat16), w_t.astype(jnp.bfloat16),
                       preferred_element_type=jnp.float32) + b
    # Full-precision reference (sanity bound on the bf16 cast error).
    ref_f32 = cls @ w_t + b

    assert jnp.allclose(out, ref_bf16, atol=1e-4, rtol=1e-4)
    assert jnp.allclose(out, ref_f32, atol=5e-2, rtol=5e-2)

    print("KERNEL_OK")
</pallas_src>

<mosaic_0001>
module attributes {stable_mosaic.version = 11 : i64} {
  func.func @cls_head_kernel(%arg0: i32, %arg1: memref<8x32xf32, #tpu.memory_space<vmem>>, %arg2: memref<32x128xbf16, #tpu.memory_space<vmem>>, %arg3: memref<1x128xf32, #tpu.memory_space<vmem>>, %arg4: memref<8x128xf32, #tpu.memory_space<vmem>>) attributes {dimension_semantics = [#tpu.dimension_semantics<parallel>], iteration_bounds = array<i64: 1>, scalar_prefetch = 0 : i64, scratch_operands = 0 : i64, tpu.core_type = #tpu.core_type<tc>, window_params = [{transform_indices = @transform_0, window_bounds = array<i64: 8, 32>}, {pipeline_mode = #tpu.pipeline_mode<synchronous>, transform_indices = @transform_1, window_bounds = array<i64: 32, 128>}, {pipeline_mode = #tpu.pipeline_mode<synchronous>, transform_indices = @transform_2, window_bounds = array<i64: 1, 128>}, {transform_indices = @transform_3, window_bounds = array<i64: 8, 128>}]} {
    %c0 = arith.constant 0 : index
    %c0_0 = arith.constant 0 : index
    %0 = vector.load %arg1[%c0, %c0_0] : memref<8x32xf32, #tpu.memory_space<vmem>>, vector<8x32xf32>
    %1 = arith.truncf %0 : vector<8x32xf32> to vector<8x32xbf16>
    %c0_1 = arith.constant 0 : index
    %c0_2 = arith.constant 0 : index
    %2 = vector.load %arg2[%c0_1, %c0_2] : memref<32x128xbf16, #tpu.memory_space<vmem>>, vector<32x128xbf16>
    %cst = arith.constant dense<0.000000e+00> : vector<8x128xf32>
    %3 = tpu.matmul %1, %2, %cst {dimension_numbers = #tpu.dot_dimension_numbers<[1], [0], [0], [1], [0, 0, 1, 1], [], []>} : vector<8x32xbf16>, vector<32x128xbf16>, vector<8x128xf32> -> vector<8x128xf32>
    %c0_3 = arith.constant 0 : index
    %c0_4 = arith.constant 0 : index
    %4 = vector.load %arg3[%c0_3, %c0_4] : memref<1x128xf32, #tpu.memory_space<vmem>>, vector<1x128xf32>
    %5 = vector.broadcast %4 : vector<1x128xf32> to vector<8x128xf32>
    %6 = arith.addf %3, %5 : vector<8x128xf32>
    %c0_5 = arith.constant 0 : index
    %c0_6 = arith.constant 0 : index
    %7 = vector.load %arg4[%c0_5, %c0_6] : memref<8x128xf32, #tpu.memory_space<vmem>>, vector<8x128xf32>
    tpu.vector_store %arg4[%c0_5, %c0_6], %6 {strides = array<i32>} : memref<8x128xf32, #tpu.memory_space<vmem>>, vector<8x128xf32>,
    return
  }
  func.func @transform_0(%arg0: i32) -> (i32, i32) {
    %c0_i32 = arith.constant 0 : i32
    %c0_i32_0 = arith.constant 0 : i32
    return %arg0, %c0_i32 : i32, i32
  }
  func.func @transform_1(%arg0: i32) -> (i32, i32) {
    %c0_i32 = arith.constant 0 : i32
    %c0_i32_0 = arith.constant 0 : i32
    %c0_i32_1 = arith.constant 0 : i32
    return %c0_i32, %c0_i32_0 : i32, i32
  }
  func.func @transform_2(%arg0: i32) -> (i32, i32) {
    %c0_i32 = arith.constant 0 : i32
    %c0_i32_0 = arith.constant 0 : i32
    %c0_i32_1 = arith.constant 0 : i32
    return %c0_i32, %c0_i32_0 : i32, i32
  }
  func.func @transform_3(%arg0: i32) -> (i32, i32) {
    %c0_i32 = arith.constant 0 : i32
    %c0_i32_0 = arith.constant 0 : i32
    return %arg0, %c0_i32 : i32, i32
  }
}

</mosaic_0001>

<llo_original>
// kernel: tpu_custom_call.1
$region0: #{tpu_custom_call.1}
  #allocation0 [shape = 'u32[]', space=smem, size = 0x4, offset = 0x4, fixed_abs, tag = 'smem constant byte address 0x4 - core index']
  #allocation1 [shape = 'u32[72,128]{1,0:T(1,128)}', space=vmem, size = 0x9000, scoped, tag = 'internal scratch']
  %s0 = inlined_call_operand.hbm [shape: f32[8,32], index: 0, kind: input, shape index: {}]
  %s1 = inlined_call_operand.hbm [shape: bf16[32,128], index: 1, kind: input, shape index: {}]
  %s2 = inlined_call_operand.vmem [shape: f32[1,128], index: 2, kind: input, shape index: {}]
  %s3 = inlined_call_operand.hbm [shape: f32[8,128], index: 3, kind: output, shape index: {}]
  %s4 = sld [smem:[#allocation0]]
  $region30: #{tpu_custom_call.1} parent=0
    _
  %s6 = ssub.s32 1, %s4
  %s7 = scalar_select 0, %s6, %s4
  $region1: #{tpu_custom_call.1} parent=0
    #allocation2 [shape = 'u8[4096]{0}', space=vmem, size = 0x1000, scoped, tag = 'input window, operand 0, single buffered']
    #allocation3 [shape = 's32[1]{0}', space=sflag, size = 0x4, scoped, tag = 'scoped memory for tpu_custom_call.1']
    #allocation4 [shape = 's32[1]{0}', space=sflag, size = 0x4, scoped, tag = 'scoped memory for tpu_custom_call.1']
    #allocation5 [shape = 'u8[8192]{0}', space=vmem, size = 0x2000, scoped, tag = 'input window, operand 1, single buffered']
    #allocation6 [shape = 's32[1]{0}', space=sflag, size = 0x4, scoped, tag = 'scoped memory for tpu_custom_call.1']
    #allocation7 [shape = 'u8[4096]{0}', space=vmem, size = 0x1000, scoped, tag = 'output window, operand 0, single buffered']
    %8 = vsyncpa [#allocation3], 0
    %9 = vsyncpa [#allocation6], 0
    %10 = vsyncpa [#allocation4], 0
    // Predicated region
    $region2: #{tpu_custom_call.1} parent=1 // pred_check
      _
    $region3: #{tpu_custom_call.1} parent=1 // pred_check_branch
      %12 = sbr.rel (0) target = $region5
    $region4: #{tpu_custom_call.1} parent=1 // pred_region
      %14 = vsyncadd [#allocation3], 0
      %s16 = sshll.u32 %s0, 4
      %s17 = int_to_ptr.hbm [resolvable:$true] %s16
      %s18 = sshll.u32 [#allocation2], 4
      %s19 = int_to_ptr.vmem [resolvable:$true] %s18
      %21 = dma.hbm_to_vmem [thread:$0]  %s17, 128, %s19, [#allocation3]
    $region5: #{tpu_custom_call.1} parent=1 // pred_fallthru
      _
    // Predicated region
    $region6: #{tpu_custom_call.1} parent=1 // pred_check
      _
    $region7: #{tpu_custom_call.1} parent=1 // pred_check_branch
      %23 = sbr.rel (0) target = $region9
    $region8: #{tpu_custom_call.1} parent=1 // pred_region
      %25 = vsyncadd [#allocation6], 0
      %s26 = sshll.u32 %s1, 4
      %s27 = int_to_ptr.hbm [resolvable:$true] %s26
      %s28 = sshll.u32 [#allocation5], 4
      %s29 = int_to_ptr.vmem [resolvable:$true] %s28
      %34 = dma.hbm_to_vmem [thread:$0]  %s27, 256, %s29, [#allocation6], 64, 64, 4
    $region9: #{tpu_custom_call.1} parent=1 // pred_fallthru
      _
    // Predicated region
    $region10: #{tpu_custom_call.1} parent=1 // pred_check
      _
    $region11: #{tpu_custom_call.1} parent=1 // pred_check_branch
      %36 = sbr.rel (0) target = $region13
    $region12: #{tpu_custom_call.1} parent=1 // pred_region
      _
    $region13: #{tpu_custom_call.1} parent=1 // pred_fallthru
      _
    // Predicated region
    $region14: #{tpu_custom_call.1} parent=1 // pred_check
      _
    $region15: #{tpu_custom_call.1} parent=1 // pred_check_branch
      %38 = sbr.rel (0) target = $region17
    $region16: #{tpu_custom_call.1} parent=1 // pred_region
      %40 = dma.done [#allocation3], 128
    $region17: #{tpu_custom_call.1} parent=1 // pred_fallthru
      _
    // Predicated region
    $region18: #{tpu_custom_call.1} parent=1 // pred_check
      _
    $region19: #{tpu_custom_call.1} parent=1 // pred_check_branch
      %42 = sbr.rel (0) target = $region21
    $region20: #{tpu_custom_call.1} parent=1 // pred_region
      %44 = dma.done [#allocation6], 256
    $region21: #{tpu_custom_call.1} parent=1 // pred_fallthru
      _
    %v46 = vld [vmem:[#allocation2] sm:$0xff]
    %v47 = vpack.c.bf16 %v46, %v46
    %v48 = vld [vmem:[#allocation5] sm:$0xf]
    %v49 = vld [vmem:[#allocation5 + $0x4] sm:$0xf]
    %v50 = vld [vmem:[#allocation5 + $0x8] sm:$0xf]
    %v51 = vld [vmem:[#allocation5 + $0xc] sm:$0xf]
    %v52 = vld [vmem:[%s2] sm:$0x1]
    %v54 = vperm.slane %v52, 0
    %v60 = vunpack.c.l.b16 %v48
    %v61 = vunpack.c.l.b16 %v49
    %v62 = vunpack.c.l.b16 %v50
    %v63 = vunpack.c.l.b16 %v51
    %v64 = vpack.c.b16 %v61, %v60
    %v65 = vpack.c.b16 %v63, %v62
    %vm68 = vcmask 261120
    %v70 = vsel %vm68, %v47, 0
    %72 = vmatpush.bf16.msra.mxu0 0
    %73 = vmatpush.bf16.msra.mxu0 0
    %74 = vmatpush.bf16.msra.mxu0 0
    %75 = vmatpush.bf16.msra.mxu0 0
    %76 = vmatpush.bf16.msra.mxu0 0
    %77 = vmatpush.bf16.msra.mxu0 0
    %78 = vmatpush.bf16.msra.mxu0 %v65
    %79 = vmatpush.bf16.msra.mxu0 %v64
    %80 = vmatmul.bf16.gmra.mxu0 %v70
    %v81 = vpop.f32.mrf.mxu0
    %v82 = vadd.f32 %v54, %v81
    %v83 = vpop.f32.mrf.mxu0
    %84 = vdwg.mxu0
    %85 = vst [vmem:[#allocation7] sm:$0xff] %v82
    // Predicated region
    $region22: #{tpu_custom_call.1} parent=1 // pred_check
      _
    $region23: #{tpu_custom_call.1} parent=1 // pred_check_branch
      %87 = sbr.rel (0) target = $region25
    $region24: #{tpu_custom_call.1} parent=1 // pred_region
      %89 = vsyncadd [#allocation4], 0
      %s91 = sshll.u32 [#allocation7], 4
      %s92 = int_to_ptr.vmem [resolvable:$true] %s91
      %s93 = sshll.u32 %s3, 4
      %s94 = int_to_ptr.hbm [resolvable:$true] %s93
      %96 = dma.vmem_to_hbm [thread:$0]  %s92, 128, %s94, [#allocation4]
    $region25: #{tpu_custom_call.1} parent=1 // pred_fallthru
      _
    // Predicated region
    $region26: #{tpu_custom_call.1} parent=1 // pred_check
      _
    $region27: #{tpu_custom_call.1} parent=1 // pred_check_branch
      %98 = sbr.rel (0) target = $region29
    $region28: #{tpu_custom_call.1} parent=1 // pred_region
      %100 = dma.done [#allocation4], 128
    $region29: #{tpu_custom_call.1} parent=1 // pred_fallthru
      _
    %101 = vsyncpa [#allocation3], 1
    %102 = vsyncpa [#allocation6], 1
    %103 = vsyncpa [#allocation4], 1

</llo_original>
